<compile_context>
chip_gen: v6e
topology: v6e:2x2x1
jax: 0.10.0
libtpu: 0.0.40
codegen_flags: <defaults>
</compile_context>

<pallas_src>
import math

import jax
import jax.numpy as jnp
from jax.experimental import pallas as pl
from jax.experimental.pallas import tpu as pltpu


_SUBLANE_GRANULE = 16  # bf16 packs 16 rows per vreg tile; align all blocks.


def _make_kernel(maxh: float, f0: float):
    def kernel(prod_ref, targ_ref, loss_ref, h_ref, rh_ref):
        y = prod_ref[...].astype(jnp.float32)
        t = targ_ref[...].astype(jnp.float32)

        gt = y > t
        r_yt = jnp.round(y / t)   # integer candidate used when y > t  (>= 1 there)
        r_ty = jnp.round(t / y)   # integer candidate used when y <= t (>= 1 there)

        # rh (raw harmonic h0): round(y/t) if y > t else 1/round(t/y).
        # NOTE: 1/r_ty may be inf on the y > t side (r_ty can round to 0);
        # it is only ever select-masked, never fed into arithmetic.
        rh = jnp.where(gt, r_yt, 1.0 / r_ty)

        # validity: round(1/rh) <= maxh  and  rh <= maxh  and  rh > 0
        #  - y >  t: rh >= 1 so round(1/rh) in {0, 1} <= maxh (needs maxh >= 1)
        #  - y <= t: round(1/rh) == round(t/y) == r_ty (already computed), so
        #    no extra divide is required.
        valid = (gt | (r_ty <= maxh)) & (rh <= maxh) & (rh > 0.0)
        h = jnp.where(valid, rh, 1.0)  # f32, used for the loss

        # loss = | log2( (y + f0) / (h*t + f0) ) |
        loss = jnp.abs(jnp.log2((y + f0) / (h * t + f0)))

        loss_ref[...] = loss
        h_ref[...] = h.astype(h_ref.dtype)
        rh_ref[...] = rh.astype(rh_ref.dtype)

    return kernel


def _pick_lane_width(n: int, last_dim):
    """Choose a lane-dense width W (multiple of 128). Returns (W, pad)."""
    candidates = []
    if last_dim is not None and 128 <= last_dim <= 8192 and last_dim % 128 == 0:
        candidates.append(last_dim)          # natural layout, reshape is free
    candidates += [4096, 2048, 1024, 512, 256, 128]
    for w in candidates:
        if n % w == 0:
            return w, 0
    w = 512
    return w, (-n) % w                        # small pad, sliced off afterwards


def make_elem_exp_hloss(maxh: float, f0: float,
                        block_budget_bytes: int = 4 * 1024 * 1024):
    """Builds a Pallas-backed element-wise ElemExpHLoss forward.

    Returns forward(product, target) -> (loss f32, h bf16, rh bf16), all in
    the input shape.  `h`/`rh` mirror the values the torch module stashes on
    self; the loss itself is computed entirely in f32.
    """
    # The round(1/h0) <= maxh folding for the y > t branch is only valid when
    # maxh >= 1 (there h0 >= 1, so round(1/h0) is 0 or 1).
    assert maxh >= 1.0, "maxh must be >= 1 for this kernel"
    maxh = float(maxh)
    f0 = float(f0)
    kernel = _make_kernel(maxh, f0)

    def forward(product: jax.Array, target: jax.Array):
        assert product.shape == target.shape and product.ndim >= 1
        orig_shape = product.shape
        n = math.prod(orig_shape)
        last = orig_shape[-1]

        # ---- lane-dense layout (elementwise op: layout plumbing is free) ----
        lane_w, pad = _pick_lane_width(n, last)
        p_flat = product.reshape(-1)
        t_flat = target.reshape(-1)
        if pad:
            # pad value 1.0 is safe: h=1, loss=0, no inf/nan in the pad region
            p_flat = jnp.concatenate([p_flat, jnp.ones((pad,), p_flat.dtype)])
            t_flat = jnp.concatenate([t_flat, jnp.ones((pad,), t_flat.dtype)])
        rows = (n + pad) // lane_w
        p2 = p_flat.reshape(rows, lane_w)
        t2 = t_flat.reshape(rows, lane_w)

        # ---- tile selection: ~block_budget_bytes per block-set, >= 2 steps ----
        in_bytes = p2.dtype.itemsize + t2.dtype.itemsize
        out_bytes = 4 + 2 + 2                       # f32 loss + bf16 h + bf16 rh
        bytes_per_row = (in_bytes + out_bytes) * lane_w

        g = _SUBLANE_GRANULE
        if rows <= g:
            tile_r = rows                           # single full-extent block
        else:
            budget_rows = max(g, block_budget_bytes // bytes_per_row)
            tile_r = max(g, (min(budget_rows, rows) // g) * g)
            if rows >= 2 * g:
                # keep the grid >= 2 steps so v7x megacore can shard the axis
                tile_r = max(g, min(tile_r, ((rows // 2) // g) * g))
        grid = (pl.cdiv(rows, tile_r),)             # ragged last block is fine

        spec = pl.BlockSpec((tile_r, lane_w), lambda i: (i, 0))
        out_shape = (
            jax.ShapeDtypeStruct((rows, lane_w), jnp.float32),   # loss
            jax.ShapeDtypeStruct((rows, lane_w), jnp.bfloat16),  # h   (self.h)
            jax.ShapeDtypeStruct((rows, lane_w), jnp.bfloat16),  # rh  (self.rh)
        )
        cost = pl.CostEstimate(
            flops=12 * rows * lane_w,
            transcendentals=4 * rows * lane_w,       # 3 divides + log2 per elem
            bytes_accessed=rows * lane_w * (in_bytes + out_bytes),
        )

        loss2, h2, rh2 = pl.pallas_call(
            kernel,
            out_shape=out_shape,
            grid=grid,
            in_specs=[spec, spec],
            out_specs=(spec, spec, spec),
            compiler_params=pltpu.CompilerParams(
                dimension_semantics=("parallel",),
            ),
            cost_estimate=cost,
        )(p2, t2)

        def unpack(a):
            a = a.reshape(-1)
            if pad:
                a = a[:n]
            return a.reshape(orig_shape)

        return unpack(loss2), unpack(h2), unpack(rh2)

    return forward


def _reference(product, target, maxh, f0):
    """Vectorized numpy reference mirroring the torch module (unfolded check)."""
    import numpy as np

    y = np.asarray(product, dtype=np.float32)
    t = np.asarray(target, dtype=np.float32)
    gt = y > t
    with np.errstate(divide="ignore", invalid="ignore"):
        r_yt = np.round(y / t)
        r_ty = np.round(t / y)
        rh = np.where(gt, r_yt, 1.0 / r_ty)     # finite for positive inputs
        inv_rh = np.round(1.0 / rh)
    valid = (inv_rh <= maxh) & (rh <= maxh) & (rh > 0.0)
    h = np.where(valid, rh, 1.0)
    loss = np.abs(np.log2((y + f0) / (h * t + f0)))
    return loss.astype(np.float32), h.astype(np.float32), rh.astype(np.float32)


if __name__ == "__main__":
    import numpy as np

    # deterministic "config": cfg.maxh, cfg.base_freq
    MAXH = 8.0
    F0 = 0.025

    fwd = make_elem_exp_hloss(MAXH, F0)

    key = jax.random.PRNGKey(0)

    # --- case 1: lane-dense natural layout, multi-step grid (rows split in 2) ---
    kp, kt = jax.random.split(key)
    R, C = 64, 256
    product = jax.random.uniform(kp, (R, C), jnp.float32, minval=0.05, maxval=4.0)
    target = jax.random.uniform(kt, (R, C), jnp.float32, minval=0.05, maxval=4.0)

    ref_loss, ref_h, ref_rh = _reference(np.asarray(product), np.asarray(target),
                                         MAXH, F0)
    loss, h, rh = jax.block_until_ready(fwd(product, target))

    np.testing.assert_allclose(np.asarray(loss), ref_loss, rtol=1e-4, atol=1e-4)
    np.testing.assert_allclose(np.asarray(h.astype(jnp.float32)), ref_h,
                               rtol=1e-2, atol=1e-2)   # bf16 outputs
    np.testing.assert_allclose(np.asarray(rh.astype(jnp.float32)), ref_rh,
                               rtol=1e-2, atol=1e-2)   # bf16 outputs

    # --- case 2: ragged shape -> wrapper pads/flattens to a lane-dense slab ---
    kp2, kt2 = jax.random.split(jax.random.PRNGKey(1))
    product2 = jax.random.uniform(kp2, (10, 100), jnp.float32, minval=0.05, maxval=4.0)
    target2 = jax.random.uniform(kt2, (10, 100), jnp.float32, minval=0.05, maxval=4.0)

    ref_loss2, ref_h2, _ = _reference(np.asarray(product2), np.asarray(target2),
                                      MAXH, F0)
    loss2, h2, _ = jax.block_until_ready(fwd(product2, target2))
    np.testing.assert_allclose(np.asarray(loss2), ref_loss2, rtol=1e-4, atol=1e-4)
    np.testing.assert_allclose(np.asarray(h2.astype(jnp.float32)), ref_h2,
                               rtol=1e-2, atol=1e-2)

    print("KERNEL_OK")
</pallas_src>

<mosaic_0001>
module attributes {stable_mosaic.version = 11 : i64} {
  func.func @kernel(%arg0: i32, %arg1: memref<32x256xf32, #tpu.memory_space<vmem>>, %arg2: memref<32x256xf32, #tpu.memory_space<vmem>>, %arg3: memref<32x256xf32, #tpu.memory_space<vmem>>, %arg4: memref<32x256xbf16, #tpu.memory_space<vmem>>, %arg5: memref<32x256xbf16, #tpu.memory_space<vmem>>) attributes {dimension_semantics = [#tpu.dimension_semantics<parallel>], iteration_bounds = array<i64: 2>, scalar_prefetch = 0 : i64, scratch_operands = 0 : i64, tpu.core_type = #tpu.core_type<tc>, window_params = [{transform_indices = @transform_0, window_bounds = array<i64: 32, 256>}, {transform_indices = @transform_1, window_bounds = array<i64: 32, 256>}, {transform_indices = @transform_2, window_bounds = array<i64: 32, 256>}, {transform_indices = @transform_3, window_bounds = array<i64: 32, 256>}, {transform_indices = @transform_4, window_bounds = array<i64: 32, 256>}]} {
    %c0 = arith.constant 0 : index
    %c0_0 = arith.constant 0 : index
    %0 = vector.load %arg1[%c0, %c0_0] : memref<32x256xf32, #tpu.memory_space<vmem>>, vector<32x256xf32>
    %c0_1 = arith.constant 0 : index
    %c0_2 = arith.constant 0 : index
    %1 = vector.load %arg2[%c0_1, %c0_2] : memref<32x256xf32, #tpu.memory_space<vmem>>, vector<32x256xf32>
    %2 = arith.cmpf ogt, %0, %1 : vector<32x256xf32>
    %3 = arith.divf %0, %1 : vector<32x256xf32>
    %4 = math.roundeven %3 : vector<32x256xf32>
    %5 = arith.divf %1, %0 : vector<32x256xf32>
    %6 = math.roundeven %5 : vector<32x256xf32>
    %cst = arith.constant 1.000000e+00 : f32
    %7 = vector.broadcast %cst : f32 to vector<32x256xf32>
    %8 = arith.divf %7, %6 : vector<32x256xf32>
    %9 = arith.select %2, %4, %8 : vector<32x256xi1>, vector<32x256xf32>
    %cst_3 = arith.constant 8.000000e+00 : f32
    %10 = vector.broadcast %cst_3 : f32 to vector<32x256xf32>
    %11 = arith.cmpf ole, %6, %10 : vector<32x256xf32>
    %12 = arith.ori %2, %11 : vector<32x256xi1>
    %cst_4 = arith.constant 8.000000e+00 : f32
    %13 = vector.broadcast %cst_4 : f32 to vector<32x256xf32>
    %14 = arith.cmpf ole, %9, %13 : vector<32x256xf32>
    %15 = arith.andi %12, %14 : vector<32x256xi1>
    %cst_5 = arith.constant 0.000000e+00 : f32
    %16 = vector.broadcast %cst_5 : f32 to vector<32x256xf32>
    %17 = arith.cmpf ogt, %9, %16 : vector<32x256xf32>
    %18 = arith.andi %15, %17 : vector<32x256xi1>
    %cst_6 = arith.constant 1.000000e+00 : f32
    %19 = vector.broadcast %cst_6 : f32 to vector<32x256xf32>
    %20 = arith.select %18, %9, %19 : vector<32x256xi1>, vector<32x256xf32>
    %cst_7 = arith.constant 2.500000e-02 : f32
    %21 = vector.broadcast %cst_7 : f32 to vector<32x256xf32>
    %22 = arith.addf %0, %21 : vector<32x256xf32>
    %23 = arith.mulf %20, %1 : vector<32x256xf32>
    %cst_8 = arith.constant 2.500000e-02 : f32
    %24 = vector.broadcast %cst_8 : f32 to vector<32x256xf32>
    %25 = arith.addf %23, %24 : vector<32x256xf32>
    %26 = arith.divf %22, %25 : vector<32x256xf32>
    %27 = math.log %26 : vector<32x256xf32>
    %cst_9 = arith.constant 2.000000e+00 : f32
    %28 = math.log %cst_9 : f32
    %29 = vector.broadcast %28 : f32 to vector<32x256xf32>
    %30 = arith.divf %27, %29 : vector<32x256xf32>
    %31 = math.absf %30 : vector<32x256xf32>
    %c0_10 = arith.constant 0 : index
    %c0_11 = arith.constant 0 : index
    %32 = vector.load %arg3[%c0_10, %c0_11] : memref<32x256xf32, #tpu.memory_space<vmem>>, vector<32x256xf32>
    tpu.vector_store %arg3[%c0_10, %c0_11], %31 {strides = array<i32>} : memref<32x256xf32, #tpu.memory_space<vmem>>, vector<32x256xf32>,
    %33 = arith.truncf %20 : vector<32x256xf32> to vector<32x256xbf16>
    %c0_12 = arith.constant 0 : index
    %c0_13 = arith.constant 0 : index
    %34 = vector.load %arg4[%c0_12, %c0_13] : memref<32x256xbf16, #tpu.memory_space<vmem>>, vector<32x256xbf16>
    tpu.vector_store %arg4[%c0_12, %c0_13], %33 {strides = array<i32>} : memref<32x256xbf16, #tpu.memory_space<vmem>>, vector<32x256xbf16>,
    %35 = arith.truncf %9 : vector<32x256xf32> to vector<32x256xbf16>
    %c0_14 = arith.constant 0 : index
    %c0_15 = arith.constant 0 : index
    %36 = vector.load %arg5[%c0_14, %c0_15] : memref<32x256xbf16, #tpu.memory_space<vmem>>, vector<32x256xbf16>
    tpu.vector_store %arg5[%c0_14, %c0_15], %35 {strides = array<i32>} : memref<32x256xbf16, #tpu.memory_space<vmem>>, vector<32x256xbf16>,
    return
  }
  func.func @transform_0(%arg0: i32) -> (i32, i32) {
    %c0_i32 = arith.constant 0 : i32
    %c0_i32_0 = arith.constant 0 : i32
    return %arg0, %c0_i32 : i32, i32
  }
  func.func @transform_1(%arg0: i32) -> (i32, i32) {
    %c0_i32 = arith.constant 0 : i32
    %c0_i32_0 = arith.constant 0 : i32
    return %arg0, %c0_i32 : i32, i32
  }
  func.func @transform_2(%arg0: i32) -> (i32, i32) {
    %c0_i32 = arith.constant 0 : i32
    %c0_i32_0 = arith.constant 0 : i32
    return %arg0, %c0_i32 : i32, i32
  }
  func.func @transform_3(%arg0: i32) -> (i32, i32) {
    %c0_i32 = arith.constant 0 : i32
    %c0_i32_0 = arith.constant 0 : i32
    return %arg0, %c0_i32 : i32, i32
  }
  func.func @transform_4(%arg0: i32) -> (i32, i32) {
    %c0_i32 = arith.constant 0 : i32
    %c0_i32_0 = arith.constant 0 : i32
    return %arg0, %c0_i32 : i32, i32
  }
}

</mosaic_0001>

<llo_original>
// kernel: tpu_custom_call.1
$region0: #{tpu_custom_call.1}
  #allocation0 [shape = 'u32[]', space=smem, size = 0x4, offset = 0x4, fixed_abs, tag = 'smem constant byte address 0x4 - core index']
  #allocation1 [shape = 'u32[144,128]{1,0:T(1,128)}', space=vmem, size = 0x12000, scoped, tag = 'internal scratch']
  %s0 = inlined_call_operand.hbm [shape: f32[64,256], index: 0, kind: input, shape index: {}]
  %s1 = inlined_call_operand.hbm [shape: f32[64,256], index: 1, kind: input, shape index: {}]
  %s2 = inlined_call_operand.hbm [shape: f32[64,256], index: 2, kind: output, shape index: {0}]
  %s3 = inlined_call_operand.hbm [shape: bf16[64,256], index: 3, kind: output, shape index: {1}]
  %s4 = inlined_call_operand.hbm [shape: bf16[64,256], index: 4, kind: output, shape index: {2}]
  %5 = xla_tuple %s2, %s3, %s4
  %s6 = sld [smem:[#allocation0]]
  $region65: #{tpu_custom_call.1} parent=0
    _
  %s8 = ssub.s32 1, %s6
  %s9 = scalar_select 0, %s8, %s6
  $region1: #{tpu_custom_call.1} parent=0
    #allocation2 [shape = 'u8[65536]{0}', space=vmem, size = 0x10000, scoped, tag = 'input window, operand 0']
    #allocation3 [shape = 's32[2]{0}', space=sflag, size = 0x8, scoped, tag = 'scoped memory for tpu_custom_call.1']
    #allocation4 [shape = 's32[2]{0}', space=sflag, size = 0x8, scoped, tag = 'scoped memory for tpu_custom_call.1']
    #allocation5 [shape = 'u8[65536]{0}', space=vmem, size = 0x10000, scoped, tag = 'input window, operand 1']
    #allocation6 [shape = 's32[2]{0}', space=sflag, size = 0x8, scoped, tag = 'scoped memory for tpu_custom_call.1']
    #allocation7 [shape = 'u8[65536]{0}', space=vmem, size = 0x10000, scoped, tag = 'output window, operand 0']
    #allocation8 [shape = 'u8[32768]{0}', space=vmem, size = 0x8000, scoped, tag = 'output window, operand 1']
    #allocation9 [shape = 's32[2]{0}', space=sflag, size = 0x8, scoped, tag = 'scoped memory for tpu_custom_call.1']
    #allocation10 [shape = 'u8[32768]{0}', space=vmem, size = 0x8000, scoped, tag = 'output window, operand 2']
    %10 = vsyncpa [#allocation3], 0
    %s11 = scalar_lea.sflag [#allocation3], 1
    %12 = vsyncpa %s11, 0
    %13 = vsyncpa [#allocation6], 0
    %s14 = scalar_lea.sflag [#allocation6], 1
    %15 = vsyncpa %s14, 0
    %16 = vsyncpa [#allocation4], 0
    %s17 = scalar_lea.sflag [#allocation4], 1
    %18 = vsyncpa %s17, 0
    %19 = vsyncpa [#allocation9], 0
    %s20 = scalar_lea.sflag [#allocation9], 1
    %21 = vsyncpa %s20, 0
    loop: start=0, step=1, limit=4
    $region2: #{tpu_custom_call.1} parent=1 // loop_pre_header
      _
    $region3: #{tpu_custom_call.1} parent=1 // loop_header
      %s23 = sphi 0, %s27
      %p24 = scmp.ge.s32.totalorder %s23, 4
      %s33 = sphi 0, %s35
      %s36 = sphi 0, %s33
      %s37 = sphi 0, %s36
      %s53 = sphi 0, %s37
      %s59 = sphi 0, %s61
      %s62 = sphi 0, %s59
      %s63 = sphi 0, %s62
      %s79 = sphi 0, %s63
      %s85 = sphi 0, %s87
      %s88 = sphi 0, %s85
      %s89 = sphi 0, %s88
      %s105 = sphi 0, %s89
      %s111 = sphi 0, %s113
      %s114 = sphi 0, %s111
      %s115 = sphi 0, %s114
      %s131 = sphi 0, %s115
      %s137 = sphi 0, %s139
      %s140 = sphi 0, %s137
      %s141 = sphi 0, %s140
      %s157 = sphi 0, %s141
    $region4: #{tpu_custom_call.1} parent=1 // loop_header_branch
      %26 = sbr.rel (%p24) target = $region8
    $region5: #{tpu_custom_call.1} parent=1 // loop_body
      %s28 = ssub.s32 %s23, 1
      %s29 = ssub.s32 %s23, 2
      %s30 = sadd.s32 %s23, 1
      %s31 = ssub.s32 %s23, %s30
      %p32 = scmp.eq.s32.totalorder %s31, 0
      %s34 = sadd.s32 %s33, 1
      %s35 = scalar_select %p32, %s33, %s34
      %p38 = pneg %p32
      %p39 = scmp.eq.s32.totalorder %s23, 1
      %p40 = por %p38, %p39
      %p41 = scmp.ne.s32.totalorder %s33, %s36
      %p42 = scmp.eq.s32.totalorder %s23, 0
      %p43 = por %p41, %p42
      %p44 = scmp.ne.s32.totalorder %s33, %s36
      %p45 = scmp.eq.s32.totalorder %s28, 1
      %p46 = por %p44, %p45
      %p47 = scmp.ne.s32.totalorder %s36, %s37
      %p48 = scmp.eq.s32.totalorder %s28, 0
      %p49 = por %p47, %p48
      %p50 = scmp.ne.s32.totalorder %s36, %s37
      %p51 = scmp.eq.s32.totalorder %s29, 1
      %p52 = por %p50, %p51
      %p54 = scmp.ne.s32.totalorder %s37, %s53
      %p55 = scmp.eq.s32.totalorder %s29, 0
      %p56 = por %p54, %p55
      %s57 = ssub.s32 %s23, %s30
      %p58 = scmp.eq.s32.totalorder %s57, 0
      %s60 = sadd.s32 %s59, 1
      %s61 = scalar_select %p58, %s59, %s60
      %p64 = pneg %p58
      %p65 = scmp.eq.s32.totalorder %s23, 1
      %p66 = por %p64, %p65
      %p67 = scmp.ne.s32.totalorder %s59, %s62
      %p68 = scmp.eq.s32.totalorder %s23, 0
      %p69 = por %p67, %p68
      %p70 = scmp.ne.s32.totalorder %s59, %s62
      %p71 = scmp.eq.s32.totalorder %s28, 1
      %p72 = por %p70, %p71
      %p73 = scmp.ne.s32.totalorder %s62, %s63
      %p74 = scmp.eq.s32.totalorder %s28, 0
      %p75 = por %p73, %p74
      %p76 = scmp.ne.s32.totalorder %s62, %s63
      %p77 = scmp.eq.s32.totalorder %s29, 1
      %p78 = por %p76, %p77
      %p80 = scmp.ne.s32.totalorder %s63, %s79
      %p81 = scmp.eq.s32.totalorder %s29, 0
      %p82 = por %p80, %p81
      %s83 = ssub.s32 %s23, %s30
      %p84 = scmp.eq.s32.totalorder %s83, 0
      %s86 = sadd.s32 %s85, 1
      %s87 = scalar_select %p84, %s85, %s86
      %p90 = pneg %p84
      %p91 = scmp.eq.s32.totalorder %s23, 1
      %p92 = por %p90, %p91
      %p93 = scmp.ne.s32.totalorder %s85, %s88
      %p94 = scmp.eq.s32.totalorder %s23, 0
      %p95 = por %p93, %p94
      %p96 = scmp.ne.s32.totalorder %s85, %s88
      %p97 = scmp.eq.s32.totalorder %s28, 1
      %p98 = por %p96, %p97
      %p99 = scmp.ne.s32.totalorder %s88, %s89
      %p100 = scmp.eq.s32.totalorder %s28, 0
      %p101 = por %p99, %p100
      %p102 = scmp.ne.s32.totalorder %s88, %s89
      %p103 = scmp.eq.s32.totalorder %s29, 1
      %p104 = por %p102, %p103
      %p106 = scmp.ne.s32.totalorder %s89, %s105
      %p107 = scmp.eq.s32.totalorder %s29, 0
      %p108 = por %p106, %p107
      %s109 = ssub.s32 %s23, %s30
      %p110 = scmp.eq.s32.totalorder %s109, 0
      %s112 = sadd.s32 %s111, 1
      %s113 = scalar_select %p110, %s111, %s112
      %p116 = pneg %p110
      %p117 = scmp.eq.s32.totalorder %s23, 1
      %p118 = por %p116, %p117
      %p119 = scmp.ne.s32.totalorder %s111, %s114
      %p120 = scmp.eq.s32.totalorder %s23, 0
      %p121 = por %p119, %p120
      %p122 = scmp.ne.s32.totalorder %s111, %s114
      %p123 = scmp.eq.s32.totalorder %s28, 1
      %p124 = por %p122, %p123
      %p125 = scmp.ne.s32.totalorder %s114, %s115
      %p126 = scmp.eq.s32.totalorder %s28, 0
      %p127 = por %p125, %p126
      %p128 = scmp.ne.s32.totalorder %s114, %s115
      %p129 = scmp.eq.s32.totalorder %s29, 1
      %p130 = por %p128, %p129
      %p132 = scmp.ne.s32.totalorder %s115, %s131
      %p133 = scmp.eq.s32.totalorder %s29, 0
      %p134 = por %p132, %p133
      %s135 = ssub.s32 %s23, %s30
      %p136 = scmp.eq.s32.totalorder %s135, 0
      %s138 = sadd.s32 %s137, 1
      %s139 = scalar_select %p136, %s137, %s138
      %p142 = pneg %p136
      %p143 = scmp.eq.s32.totalorder %s23, 1
      %p144 = por %p142, %p143
      %p145 = scmp.ne.s32.totalorder %s137, %s140
      %p146 = scmp.eq.s32.totalorder %s23, 0
      %p147 = por %p145, %p146
      %p148 = scmp.ne.s32.totalorder %s137, %s140
      %p149 = scmp.eq.s32.totalorder %s28, 1
      %p150 = por %p148, %p149
      %p151 = scmp.ne.s32.totalorder %s140, %s141
      %p152 = scmp.eq.s32.totalorder %s28, 0
      %p153 = por %p151, %p152
      %p154 = scmp.ne.s32.totalorder %s140, %s141
      %p155 = scmp.eq.s32.totalorder %s29, 1
      %p156 = por %p154, %p155
      %p158 = scmp.ne.s32.totalorder %s141, %s157
      %p159 = scmp.eq.s32.totalorder %s29, 0
      %p160 = por %p158, %p159
      %p161 = scmp.le.s32.totalorder 1, %s23
      %p162 = scmp.lt.s32.totalorder %s23, 3
      %p163 = pnand %p161, %p162
      %p164 = pneg %p163
      // Predicated region
      $region9: #{tpu_custom_call.1} parent=5 // pred_check
        _
      $region10: #{tpu_custom_call.1} parent=5 // pred_check_branch
        %166 = sbr.rel (%p163) target = $region12
      $region11: #{tpu_custom_call.1} parent=5 // pred_region
        %s167 = ssub.s32 %s23, 1
      $region12: #{tpu_custom_call.1} parent=5 // pred_fallthru
        _
      %p168 = scmp.lt.s32.totalorder %s23, 2
      // Predicated region
      $region13: #{tpu_custom_call.1} parent=5 // pred_check
        %p169 = pneg %p168
      $region14: #{tpu_custom_call.1} parent=5 // pred_check_branch
        %171 = sbr.rel (%p169) target = $region16
      $region15: #{tpu_custom_call.1} parent=5 // pred_region
        // Predicated region
        $region17: #{tpu_custom_call.1} parent=15 // pred_check
          %p172 = pneg %p43
        $region18: #{tpu_custom_call.1} parent=15 // pred_check_branch
          %174 = sbr.rel (%p172) target = $region20
        $region19: #{tpu_custom_call.1} parent=15 // pred_region
          %s175 = sand.u32 %s33, 1
          %s176 = scalar_lea.sflag [#allocation3], %s175
          %s177 = sand.u32 %s33, 1
          %s178 = smul.addr %s177, 64
          %s179 = scalar_lea.vmem [#allocation2], %s178
          %s180 = smul.u32 4, %s23
          %s182 = ssub.s32 1024, 1024
          %183 = vsyncadd %s176, %s182
          %s184 = smul.addr %s180, 2
          %s185 = smul.addr %s184, 128
          %s186 = scalar_lea.hbm %s0, %s185
          %s187 = sshll.u32 %s179, 4
          %s188 = int_to_ptr.vmem [resolvable:$true] %s187
          %193 = dma.hbm_to_vmem [thread:$0]  %s186, 1024, %s188, %s176, 256, 256, 16
        $region20: #{tpu_custom_call.1} parent=15 // pred_fallthru
          _
        // Predicated region
        $region21: #{tpu_custom_call.1} parent=15 // pred_check
          %p194 = pneg %p69
        $region22: #{tpu_custom_call.1} parent=15 // pred_check_branch
          %196 = sbr.rel (%p194) target = $region24
        $region23: #{tpu_custom_call.1} parent=15 // pred_region
          %s197 = sand.u32 %s59, 1
          %s198 = scalar_lea.sflag [#allocation6], %s197
          %s199 = sand.u32 %s59, 1
          %s200 = smul.addr %s199, 64
          %s201 = scalar_lea.vmem [#allocation5], %s200
          %s202 = smul.u32 4, %s23
          %s204 = ssub.s32 1024, 1024
          %205 = vsyncadd %s198, %s204
          %s206 = smul.addr %s202, 2
          %s207 = smul.addr %s206, 128
          %s208 = scalar_lea.hbm %s1, %s207
          %s209 = sshll.u32 %s201, 4
          %s210 = int_to_ptr.vmem [resolvable:$true] %s209
          %215 = dma.hbm_to_vmem [thread:$0]  %s208, 1024, %s210, %s198, 256, 256, 16
        $region24: #{tpu_custom_call.1} parent=15 // pred_fallthru
          _
      $region16: #{tpu_custom_call.1} parent=5 // pred_fallthru
        _
      %p216 = scmp.le.s32.totalorder 1, %s23
      %p217 = scmp.lt.s32.totalorder %s23, 3
      %p218 = pnand %p216, %p217
      %p219 = pneg %p218
      // Predicated region
      $region25: #{tpu_custom_call.1} parent=5 // pred_check
        _
      $region26: #{tpu_custom_call.1} parent=5 // pred_check_branch
        %221 = sbr.rel (%p218) target = $region28
      $region27: #{tpu_custom_call.1} parent=5 // pred_region
        %s222 = ssub.s32 %s23, 1
        %s223 = sand.u32 %s36, 1
        %s224 = scalar_lea.sflag [#allocation3], %s223
        %s225 = sand.u32 %s36, 1
        %s226 = smul.addr %s225, 64
        %s227 = scalar_lea.vmem [#allocation2], %s226
        // Predicated region
        $region29: #{tpu_custom_call.1} parent=27 // pred_check
          %p228 = pneg %p49
        $region30: #{tpu_custom_call.1} parent=27 // pred_check_branch
          %230 = sbr.rel (%p228) target = $region32
        $region31: #{tpu_custom_call.1} parent=27 // pred_region
          %231 = dma.done %s224, 1024
        $region32: #{tpu_custom_call.1} parent=27 // pred_fallthru
          _
        %s232 = sand.u32 %s62, 1
        %s233 = scalar_lea.sflag [#allocation6], %s232
        %s234 = sand.u32 %s62, 1
        %s235 = smul.addr %s234, 64
        %s236 = scalar_lea.vmem [#allocation5], %s235
        // Predicated region
        $region33: #{tpu_custom_call.1} parent=27 // pred_check
          %p237 = pneg %p75
        $region34: #{tpu_custom_call.1} parent=27 // pred_check_branch
          %239 = sbr.rel (%p237) target = $region36
        $region35: #{tpu_custom_call.1} parent=27 // pred_region
          %240 = dma.done %s233, 1024
        $region36: #{tpu_custom_call.1} parent=27 // pred_fallthru
          _
        %s241 = sand.u32 %s36, 1
        %s242 = scalar_lea.sflag [#allocation3], %s241
        %s243 = sand.u32 %s36, 1
        %s244 = smul.addr %s243, 64
        %s245 = scalar_lea.vmem [#allocation2], %s244
        %p246 = pneg %p49
        %p247 = pneg %p46
        %s248 = sand.u32 %s62, 1
        %s249 = scalar_lea.sflag [#allocation6], %s248
        %s250 = sand.u32 %s62, 1
        %s251 = smul.addr %s250, 64
        %s252 = scalar_lea.vmem [#allocation5], %s251
        %p253 = pneg %p75
        %p254 = pneg %p72
        %p255 = pneg %p101
        %p256 = pneg %p98
        %s257 = sand.u32 %s88, 1
        %s258 = scalar_lea.sflag [#allocation4], %s257
        %s259 = sand.u32 %s88, 1
        %s260 = smul.addr %s259, 64
        %s261 = scalar_lea.vmem [#allocation7], %s260
        %p262 = pneg %p127
        %p263 = pneg %p124
        %s264 = sand.u32 %s28, 1
        %s265 = scalar_lea.sflag [#allocation9], %s264
        %s266 = sand.u32 %s114, 1
        %s267 = smul.addr %s266, 32
        %s268 = scalar_lea.vmem [#allocation8], %s267
        %p269 = pneg %p153
        %p270 = pneg %p150
        %s271 = sand.u32 %s28, 1
        %s272 = scalar_lea.sflag [#allocation9], %s271
        %s273 = sand.u32 %s140, 1
        %s274 = smul.addr %s273, 32
        %s275 = scalar_lea.vmem [#allocation10], %s274
        %s276 = smul.u32 4, %s28
        %s277 = smul.u32 4, %s28
        %s278 = smul.u32 4, %s28
        %s279 = smul.u32 4, %s28
        %s280 = smul.u32 4, %s28
        %v281 = vld [vmem:[%s227] sm:$0xff]
        %v282 = vld [vmem:[%s227 + $0x8] sm:$0xff]
        %v283 = vld [vmem:[%s227 + $0x10] sm:$0xff]
        %v284 = vld [vmem:[%s227 + $0x18] sm:$0xff]
        %v285 = vld [vmem:[%s227 + $0x20] sm:$0xff]
        %v286 = vld [vmem:[%s227 + $0x28] sm:$0xff]
        %v287 = vld [vmem:[%s227 + $0x30] sm:$0xff]
        %v288 = vld [vmem:[%s227 + $0x38] sm:$0xff]
        %v289 = vld [vmem:[%s236] sm:$0xff]
        %v290 = vld [vmem:[%s236 + $0x8] sm:$0xff]
        %v291 = vld [vmem:[%s236 + $0x10] sm:$0xff]
        %v292 = vld [vmem:[%s236 + $0x18] sm:$0xff]
        %v293 = vld [vmem:[%s236 + $0x20] sm:$0xff]
        %v294 = vld [vmem:[%s236 + $0x28] sm:$0xff]
        %v295 = vld [vmem:[%s236 + $0x30] sm:$0xff]
        %v296 = vld [vmem:[%s236 + $0x38] sm:$0xff]
        %vm297 = vcmp.gt.f32.partialorder %v281, %v289
        %vm298 = vcmp.gt.f32.partialorder %v282, %v290
        %vm299 = vcmp.gt.f32.partialorder %v283, %v291
        %vm300 = vcmp.gt.f32.partialorder %v284, %v292
        %vm301 = vcmp.gt.f32.partialorder %v285, %v293
        %vm302 = vcmp.gt.f32.partialorder %v286, %v294
        %vm303 = vcmp.gt.f32.partialorder %v287, %v295
        %vm304 = vcmp.gt.f32.partialorder %v288, %v296
        %v305 = vrcp.pop %v289
        %v306 = vmul.f32 %v281, %v305
        %v307 = vrcp.pop %v290
        %v308 = vmul.f32 %v282, %v307
        %v309 = vrcp.pop %v291
        %v310 = vmul.f32 %v283, %v309
        %v311 = vrcp.pop %v292
        %v312 = vmul.f32 %v284, %v311
        %v313 = vrcp.pop %v293
        %v314 = vmul.f32 %v285, %v313
        %v315 = vrcp.pop %v294
        %v316 = vmul.f32 %v286, %v315
        %v317 = vrcp.pop %v295
        %v318 = vmul.f32 %v287, %v317
        %v319 = vrcp.pop %v296
        %v320 = vmul.f32 %v288, %v319
        %v321 = vround.ne.pseudo %v306
        %v322 = vround.ne.pseudo %v308
        %v323 = vround.ne.pseudo %v310
        %v324 = vround.ne.pseudo %v312
        %v325 = vround.ne.pseudo %v314
        %v326 = vround.ne.pseudo %v316
        %v327 = vround.ne.pseudo %v318
        %v328 = vround.ne.pseudo %v320
        %v329 = vrcp.pop %v281
        %v330 = vmul.f32 %v289, %v329
        %v331 = vrcp.pop %v282
        %v332 = vmul.f32 %v290, %v331
        %v333 = vrcp.pop %v283
        %v334 = vmul.f32 %v291, %v333
        %v335 = vrcp.pop %v284
        %v336 = vmul.f32 %v292, %v335
        %v337 = vrcp.pop %v285
        %v338 = vmul.f32 %v293, %v337
        %v339 = vrcp.pop %v286
        %v340 = vmul.f32 %v294, %v339
        %v341 = vrcp.pop %v287
        %v342 = vmul.f32 %v295, %v341
        %v343 = vrcp.pop %v288
        %v344 = vmul.f32 %v296, %v343
        %v345 = vround.ne.pseudo %v330
        %v346 = vround.ne.pseudo %v332
        %v347 = vround.ne.pseudo %v334
        %v348 = vround.ne.pseudo %v336
        %v349 = vround.ne.pseudo %v338
        %v350 = vround.ne.pseudo %v340
        %v351 = vround.ne.pseudo %v342
        %v352 = vround.ne.pseudo %v344
        %v353 = vrcp.pop %v345
        %v354 = vmul.f32 1.0, %v353
        %v355 = vrcp.pop %v346
        %v356 = vmul.f32 1.0, %v355
        %v357 = vrcp.pop %v347
        %v358 = vmul.f32 1.0, %v357
        %v359 = vrcp.pop %v348
        %v360 = vmul.f32 1.0, %v359
        %v361 = vrcp.pop %v349
        %v362 = vmul.f32 1.0, %v361
        %v363 = vrcp.pop %v350
        %v364 = vmul.f32 1.0, %v363
        %v365 = vrcp.pop %v351
        %v366 = vmul.f32 1.0, %v365
        %v367 = vrcp.pop %v352
        %v368 = vmul.f32 1.0, %v367
        %v369 = vsel %vm297, %v321, %v354
        %v370 = vsel %vm298, %v322, %v356
        %v371 = vsel %vm299, %v323, %v358
        %v372 = vsel %vm300, %v324, %v360
        %v373 = vsel %vm301, %v325, %v362
        %v374 = vsel %vm302, %v326, %v364
        %v375 = vsel %vm303, %v327, %v366
        %v376 = vsel %vm304, %v328, %v368
        %vm377 = vcmp.le.f32.partialorder %v345, 8.0
        %vm378 = vcmp.le.f32.partialorder %v346, 8.0
        %vm379 = vcmp.le.f32.partialorder %v347, 8.0
        %vm380 = vcmp.le.f32.partialorder %v348, 8.0
        %vm381 = vcmp.le.f32.partialorder %v349, 8.0
        %vm382 = vcmp.le.f32.partialorder %v350, 8.0
        %vm383 = vcmp.le.f32.partialorder %v351, 8.0
        %vm384 = vcmp.le.f32.partialorder %v352, 8.0
        %vm385 = vmor %vm297, %vm377
        %vm386 = vmor %vm298, %vm378
        %vm387 = vmor %vm299, %vm379
        %vm388 = vmor %vm300, %vm380
        %vm389 = vmor %vm301, %vm381
        %vm390 = vmor %vm302, %vm382
        %vm391 = vmor %vm303, %vm383
        %vm392 = vmor %vm304, %vm384
        %vm393 = vcmp.le.f32.partialorder %v369, 8.0
        %vm394 = vcmp.le.f32.partialorder %v370, 8.0
        %vm395 = vcmp.le.f32.partialorder %v371, 8.0
        %vm396 = vcmp.le.f32.partialorder %v372, 8.0
        %vm397 = vcmp.le.f32.partialorder %v373, 8.0
        %vm398 = vcmp.le.f32.partialorder %v374, 8.0
        %vm399 = vcmp.le.f32.partialorder %v375, 8.0
        %vm400 = vcmp.le.f32.partialorder %v376, 8.0
        %vm401 = vmand %vm385, %vm393
        %vm402 = vmand %vm386, %vm394
        %vm403 = vmand %vm387, %vm395
        %vm404 = vmand %vm388, %vm396
        %vm405 = vmand %vm389, %vm397
        %vm406 = vmand %vm390, %vm398
        %vm407 = vmand %vm391, %vm399
        %vm408 = vmand %vm392, %vm400
        %vm409 = vcmp.gt.f32.partialorder %v369, 0.0
        %vm410 = vcmp.gt.f32.partialorder %v370, 0.0
        %vm411 = vcmp.gt.f32.partialorder %v371, 0.0
        %vm412 = vcmp.gt.f32.partialorder %v372, 0.0
        %vm413 = vcmp.gt.f32.partialorder %v373, 0.0
        %vm414 = vcmp.gt.f32.partialorder %v374, 0.0
        %vm415 = vcmp.gt.f32.partialorder %v375, 0.0
        %vm416 = vcmp.gt.f32.partialorder %v376, 0.0
        %vm417 = vmand %vm401, %vm409
        %vm418 = vmand %vm402, %vm410
        %vm419 = vmand %vm403, %vm411
        %vm420 = vmand %vm404, %vm412
        %vm421 = vmand %vm405, %vm413
        %vm422 = vmand %vm406, %vm414
        %vm423 = vmand %vm407, %vm415
        %vm424 = vmand %vm408, %vm416
        %v425 = vsel %vm417, %v369, 1.0
        %v426 = vsel %vm418, %v370, 1.0
        %v427 = vsel %vm419, %v371, 1.0
        %v428 = vsel %vm420, %v372, 1.0
        %v429 = vsel %vm421, %v373, 1.0
        %v430 = vsel %vm422, %v374, 1.0
        %v431 = vsel %vm423, %v375, 1.0
        %v432 = vsel %vm424, %v376, 1.0
        %v433 = vadd.f32 %v281, 0.025
        %v434 = vadd.f32 %v282, 0.025
        %v435 = vadd.f32 %v283, 0.025
        %v436 = vadd.f32 %v284, 0.025
        %v437 = vadd.f32 %v285, 0.025
        %v438 = vadd.f32 %v286, 0.025
        %v439 = vadd.f32 %v287, 0.025
        %v440 = vadd.f32 %v288, 0.025
        %v441 = vmul.f32 %v425, %v289
        %v442 = vmul.f32 %v426, %v290
        %v443 = vmul.f32 %v427, %v291
        %v444 = vmul.f32 %v428, %v292
        %v445 = vmul.f32 %v429, %v293
        %v446 = vmul.f32 %v430, %v294
        %v447 = vmul.f32 %v431, %v295
        %v448 = vmul.f32 %v432, %v296
        %v449 = vadd.f32 %v441, 0.025
        %v450 = vadd.f32 %v442, 0.025
        %v451 = vadd.f32 %v443, 0.025
        %v452 = vadd.f32 %v444, 0.025
        %v453 = vadd.f32 %v445, 0.025
        %v454 = vadd.f32 %v446, 0.025
        %v455 = vadd.f32 %v447, 0.025
        %v456 = vadd.f32 %v448, 0.025
        %v457 = vrcp.pop %v449
        %v458 = vmul.f32 %v433, %v457
        %v459 = vrcp.pop %v450
        %v460 = vmul.f32 %v434, %v459
        %v461 = vrcp.pop %v451
        %v462 = vmul.f32 %v435, %v461
        %v463 = vrcp.pop %v452
        %v464 = vmul.f32 %v436, %v463
        %v465 = vrcp.pop %v453
        %v466 = vmul.f32 %v437, %v465
        %v467 = vrcp.pop %v454
        %v468 = vmul.f32 %v438, %v467
        %v469 = vrcp.pop %v455
        %v470 = vmul.f32 %v439, %v469
        %v471 = vrcp.pop %v456
        %v472 = vmul.f32 %v440, %v471
        %v473 = vlog2.pop %v458
        %v474 = vmul.f32 %v473, 0.6931472
        %v475 = vlog2.pop %v460
        %v476 = vmul.f32 %v475, 0.6931472
        %v477 = vlog2.pop %v462
        %v478 = vmul.f32 %v477, 0.6931472
        %v479 = vlog2.pop %v464
        %v480 = vmul.f32 %v479, 0.6931472
        %v481 = vlog2.pop %v466
        %v482 = vmul.f32 %v481, 0.6931472
        %v483 = vlog2.pop %v468
        %v484 = vmul.f32 %v483, 0.6931472
        %v485 = vlog2.pop %v470
        %v486 = vmul.f32 %v485, 0.6931472
        %v487 = vlog2.pop %v472
        %v488 = vmul.f32 %v487, 0.6931472
        %v489 = vrcp.pop 0.6931472
        %v490 = vmul.f32 %v474, %v489
        %v491 = vmul.f32 %v476, %v489
        %v492 = vmul.f32 %v478, %v489
        %v493 = vmul.f32 %v480, %v489
        %v494 = vmul.f32 %v482, %v489
        %v495 = vmul.f32 %v484, %v489
        %v496 = vmul.f32 %v486, %v489
        %v497 = vmul.f32 %v488, %v489
        %v498 = vand.u32 2147483647, %v490
        %v499 = vand.u32 2147483647, %v491
        %v500 = vand.u32 2147483647, %v492
        %v501 = vand.u32 2147483647, %v493
        %v502 = vand.u32 2147483647, %v494
        %v503 = vand.u32 2147483647, %v495
        %v504 = vand.u32 2147483647, %v496
        %v505 = vand.u32 2147483647, %v497
        %506 = vst [vmem:[%s261] sm:$0xff] %v498
        %507 = vst [vmem:[%s261 + $0x8] sm:$0xff] %v499
        %508 = vst [vmem:[%s261 + $0x10] sm:$0xff] %v500
        %509 = vst [vmem:[%s261 + $0x18] sm:$0xff] %v501
        %510 = vst [vmem:[%s261 + $0x20] sm:$0xff] %v502
        %511 = vst [vmem:[%s261 + $0x28] sm:$0xff] %v503
        %512 = vst [vmem:[%s261 + $0x30] sm:$0xff] %v504
        %513 = vst [vmem:[%s261 + $0x38] sm:$0xff] %v505
        %v514 = vpack.c.bf16 %v427, %v425
        %v515 = vpack.c.bf16 %v428, %v426
        %v516 = vpack.c.bf16 %v431, %v429
        %v517 = vpack.c.bf16 %v432, %v430
        %v522 = vunpack.c.l.b16 %v514
        %v523 = vunpack.c.l.b16 %v515
        %v524 = vunpack.c.h.b16 %v514
        %v525 = vunpack.c.h.b16 %v515
        %v526 = vunpack.c.l.b16 %v516
        %v527 = vunpack.c.l.b16 %v517
        %v528 = vunpack.c.h.b16 %v516
        %v529 = vunpack.c.h.b16 %v517
        %v530 = vpack.c.b16 %v523, %v522
        %v531 = vpack.c.b16 %v525, %v524
        %v532 = vpack.c.b16 %v527, %v526
        %v533 = vpack.c.b16 %v529, %v528
        %538 = vst [vmem:[%s268] sm:$0xff] %v530
        %539 = vst [vmem:[%s268 + $0x8] sm:$0xff] %v531
        %540 = vst [vmem:[%s268 + $0x10] sm:$0xff] %v532
        %541 = vst [vmem:[%s268 + $0x18] sm:$0xff] %v533
        %v542 = vpack.c.bf16 %v371, %v369
        %v543 = vpack.c.bf16 %v372, %v370
        %v544 = vpack.c.bf16 %v375, %v373
        %v545 = vpack.c.bf16 %v376, %v374
        %v550 = vunpack.c.l.b16 %v542
        %v551 = vunpack.c.l.b16 %v543
        %v552 = vunpack.c.h.b16 %v542
        %v553 = vunpack.c.h.b16 %v543
        %v554 = vunpack.c.l.b16 %v544
        %v555 = vunpack.c.l.b16 %v545
        %v556 = vunpack.c.h.b16 %v544
        %v557 = vunpack.c.h.b16 %v545
        %v558 = vpack.c.b16 %v551, %v550
        %v559 = vpack.c.b16 %v553, %v552
        %v560 = vpack.c.b16 %v555, %v554
        %v561 = vpack.c.b16 %v557, %v556
        %566 = vst [vmem:[%s275] sm:$0xff] %v558
        %567 = vst [vmem:[%s275 + $0x8] sm:$0xff] %v559
        %568 = vst [vmem:[%s275 + $0x10] sm:$0xff] %v560
        %569 = vst [vmem:[%s275 + $0x18] sm:$0xff] %v561
        %s570 = sand.u32 %s88, 1
        %s571 = scalar_lea.sflag [#allocation4], %s570
        %s572 = sand.u32 %s88, 1
        %s573 = smul.addr %s572, 64
        %s574 = scalar_lea.vmem [#allocation7], %s573
        %s575 = sand.u32 %s28, 1
        %s576 = scalar_lea.sflag [#allocation9], %s575
        %s577 = sand.u32 %s114, 1
        %s578 = smul.addr %s577, 32
        %s579 = scalar_lea.vmem [#allocation8], %s578
        %s580 = sand.u32 %s28, 1
        %s581 = scalar_lea.sflag [#allocation9], %s580
        %s582 = sand.u32 %s140, 1
        %s583 = smul.addr %s582, 32
        %s584 = scalar_lea.vmem [#allocation10], %s583
        // Predicated region
        $region37: #{tpu_custom_call.1} parent=27 // pred_check
          %p585 = pneg %p98
        $region38: #{tpu_custom_call.1} parent=27 // pred_check_branch
          %587 = sbr.rel (%p585) target = $region40
        $region39: #{tpu_custom_call.1} parent=27 // pred_region
          %s588 = smul.u32 4, %s28
          %s590 = ssub.s32 1024, 1024
          %591 = vsyncadd %s571, %s590
          %s592 = smul.addr %s588, 2
          %s593 = smul.addr %s592, 128
          %s594 = scalar_lea.hbm %s2, %s593
          %s595 = sshll.u32 %s574, 4
          %s596 = int_to_ptr.vmem [resolvable:$true] %s595
          %601 = dma.vmem_to_hbm [thread:$0]  %s596, 1024, %s594, %s571, 256, 256, 16
        $region40: #{tpu_custom_call.1} parent=27 // pred_fallthru
          _
        // Predicated region
        $region41: #{tpu_custom_call.1} parent=27 // pred_check
          %p602 = pneg %p124
        $region42: #{tpu_custom_call.1} parent=27 // pred_check_branch
          %604 = sbr.rel (%p602) target = $region44
        $region43: #{tpu_custom_call.1} parent=27 // pred_region
          %s605 = smul.u32 4, %s28
          %s607 = ssub.s32 512, 512
          %608 = vsyncadd %s576, %s607
          %s609 = smul.addr %s605, 2
          %s610 = smul.addr %s609, 64
          %s611 = scalar_lea.hbm %s3, %s610
          %s612 = sshll.u32 %s579, 4
          %s613 = int_to_ptr.vmem [resolvable:$true] %s612
          %618 = dma.vmem_to_hbm [thread:$0]  %s613, 512, %s611, %s576, 128, 128, 8
        $region44: #{tpu_custom_call.1} parent=27 // pred_fallthru
          _
        // Predicated region
        $region45: #{tpu_custom_call.1} parent=27 // pred_check
          %p619 = pneg %p150
        $region46: #{tpu_custom_call.1} parent=27 // pred_check_branch
          %621 = sbr.rel (%p619) target = $region48
        $region47: #{tpu_custom_call.1} parent=27 // pred_region
          %s622 = smul.u32 4, %s28
          %s624 = ssub.s32 512, 512
          %625 = vsyncadd %s581, %s624
          %s626 = smul.addr %s622, 2
          %s627 = smul.addr %s626, 64
          %s628 = scalar_lea.hbm %s4, %s627
          %s629 = sshll.u32 %s584, 4
          %s630 = int_to_ptr.vmem [resolvable:$true] %s629
          %635 = dma.vmem_to_hbm [thread:$0]  %s630, 512, %s628, %s581, 128, 128, 8
        $region48: #{tpu_custom_call.1} parent=27 // pred_fallthru
          _
      $region28: #{tpu_custom_call.1} parent=5 // pred_fallthru
        _
      %p636 = scmp.le.s32.totalorder 2, %s23
      // Predicated region
      $region49: #{tpu_custom_call.1} parent=5 // pred_check
        %p637 = pneg %p636
      $region50: #{tpu_custom_call.1} parent=5 // pred_check_branch
        %639 = sbr.rel (%p637) target = $region52
      $region51: #{tpu_custom_call.1} parent=5 // pred_region
        %s640 = ssub.s32 %s23, 2
        // Predicated region
        $region53: #{tpu_custom_call.1} parent=51 // pred_check
          %p641 = pneg %p104
        $region54: #{tpu_custom_call.1} parent=51 // pred_check_branch
          %643 = sbr.rel (%p641) target = $region56
        $region55: #{tpu_custom_call.1} parent=51 // pred_region
          %s644 = sand.u32 %s89, 1
          %s645 = scalar_lea.sflag [#allocation4], %s644
          %s646 = sand.u32 %s89, 1
          %s647 = smul.addr %s646, 64
          %s648 = scalar_lea.vmem [#allocation7], %s647
          %649 = dma.done %s645, 1024
        $region56: #{tpu_custom_call.1} parent=51 // pred_fallthru
          _
        // Predicated region
        $region57: #{tpu_custom_call.1} parent=51 // pred_check
          %p650 = pneg %p130
        $region58: #{tpu_custom_call.1} parent=51 // pred_check_branch
          %652 = sbr.rel (%p650) target = $region60
        $region59: #{tpu_custom_call.1} parent=51 // pred_region
          %s653 = sand.u32 %s29, 1
          %s654 = scalar_lea.sflag [#allocation9], %s653
          %s655 = sand.u32 %s115, 1
          %s656 = smul.addr %s655, 32
          %s657 = scalar_lea.vmem [#allocation8], %s656
          %658 = dma.done %s654, 512
        $region60: #{tpu_custom_call.1} parent=51 // pred_fallthru
          _
        // Predicated region
        $region61: #{tpu_custom_call.1} parent=51 // pred_check
          %p659 = pneg %p156
        $region62: #{tpu_custom_call.1} parent=51 // pred_check_branch
          %661 = sbr.rel (%p659) target = $region64
        $region63: #{tpu_custom_call.1} parent=51 // pred_region
          %s662 = sand.u32 %s29, 1
          %s663 = scalar_lea.sflag [#allocation9], %s662
          %s664 = sand.u32 %s141, 1
          %s665 = smul.addr %s664, 32
          %s666 = scalar_lea.vmem [#allocation10], %s665
          %667 = dma.done %s663, 512
        $region64: #{tpu_custom_call.1} parent=51 // pred_fallthru
          _
      $region52: #{tpu_custom_call.1} parent=5 // pred_fallthru
        _
    $region6: #{tpu_custom_call.1} parent=1 // loop_footer
      %s27 = sadd.s32 1, %s23
    $region7: #{tpu_custom_call.1} parent=1 // loop_footer_branch
      %22 = sbr.rel target = $region3
    $region8: #{tpu_custom_call.1} parent=1 // loop_exit
      _
    %668 = vsyncpa [#allocation3], 1
    %s669 = scalar_lea.sflag [#allocation3], 1
    %670 = vsyncpa %s669, 1
    %671 = vsyncpa [#allocation6], 1
    %s672 = scalar_lea.sflag [#allocation6], 1
    %673 = vsyncpa %s672, 1
    %674 = vsyncpa [#allocation4], 1
    %s675 = scalar_lea.sflag [#allocation4], 1
    %676 = vsyncpa %s675, 1
    %677 = vsyncpa [#allocation9], 1
    %s678 = scalar_lea.sflag [#allocation9], 1
    %679 = vsyncpa %s678, 1

</llo_original>
